<compile_context>
chip_gen: v5e
topology: v5e:2x2
jax: 0.10.0
libtpu: 0.0.40
codegen_flags: <defaults>
</compile_context>

<pallas_src>
import functools

import jax
import jax.numpy as jnp
from jax.experimental import pallas as pl
from jax.experimental.pallas import tpu as pltpu


def _sdpa_kernel(*refs, inv_scale, has_mask):
    if has_mask:
        mask_ref, q_ref, k_ref, v_ref, attn_ref, out_ref = refs
    else:
        q_ref, k_ref, v_ref, attn_ref, out_ref = refs
        mask_ref = None

    q = q_ref[...]          # (Bb, Lq, D)
    k = k_ref[...]          # (Bb, Lk, D)
    v = v_ref[...]          # (Bb, Lk, Dv)

    # u = (q @ k^T) / scale   (scale folded in as one Python-float constant mul)
    u = jnp.einsum("bqd,bkd->bqk", q, k,
                   preferred_element_type=jnp.float32) * inv_scale

    if has_mask:
        # masked_fill(mask, -inf): mask is int8 (nonzero == masked)
        u = jnp.where(mask_ref[...] != 0, -jnp.inf, u)

    # Numerically stable softmax along the key axis (matches nn.Softmax(dim=2)).
    m = jnp.max(u, axis=-1, keepdims=True)
    p = jnp.exp(u - m)                              # EUP exp
    denom = jnp.sum(p, axis=-1, keepdims=True)
    attn = p / denom                                # exact normalization

    attn_ref[...] = attn.astype(attn_ref.dtype)
    out_ref[...] = jnp.einsum("bqk,bkd->bqd", attn.astype(v.dtype), v,
                              preferred_element_type=jnp.float32
                              ).astype(out_ref.dtype)


def _pick_batch_block(B, per_batch_bytes, budget_bytes=8 * 1024 * 1024):
    """Largest Bb that fits a per-step VMEM budget, divides B, and keeps the
    grid length >= 2 when B > 1 (so both v7x TensorCores get work)."""
    cap = max(1, budget_bytes // max(1, per_batch_bytes))
    bb = min(B, cap)
    if B > 1 and bb >= B:           # keep at least 2 grid steps for megacore
        bb = pl.cdiv(B, 2)
    while B % bb != 0:              # avoid padded partial blocks
        bb -= 1
    return bb


def sdpa_forward(q, k, v, scale, mask=None, *, block_b=None):
    """Pallas ScaledDotProductAttention. Returns (attn, output) like the module."""
    B, Lq, D = q.shape
    _, Lk, Dv = v.shape
    inv_scale = float(1.0 / scale)          # plain Python float -> no captured const
    has_mask = mask is not None
    out_dtype = q.dtype

    # Per-batch block footprint (f32 q/k/v/out, f32 attn, int8 mask).
    per_batch_bytes = 4 * (Lq * D + Lk * D + Lk * Dv + Lq * Lk + Lq * Dv)
    if has_mask:
        per_batch_bytes += Lq * Lk

    Bb = block_b if block_b is not None else _pick_batch_block(B, per_batch_bytes)
    grid = (B // Bb,)

    # Explicit scoped-VMEM limit: double-buffered blocks + headroom, capped
    # below the smallest physical VMEM across generations (v7x: 64 MiB).
    block_bytes = Bb * per_batch_bytes
    vmem_limit = int(min(48 * 1024 * 1024, max(32 * 1024 * 1024, 4 * block_bytes)))

    kernel = functools.partial(_sdpa_kernel, inv_scale=inv_scale,
                               has_mask=has_mask)

    in_specs = [
        pl.BlockSpec((Bb, Lq, D), lambda b: (b, 0, 0)),
        pl.BlockSpec((Bb, Lk, D), lambda b: (b, 0, 0)),
        pl.BlockSpec((Bb, Lk, Dv), lambda b: (b, 0, 0)),
    ]
    args = [q, k, v]
    if has_mask:
        in_specs = [pl.BlockSpec((Bb, Lq, Lk), lambda b: (b, 0, 0))] + in_specs
        args = [mask.astype(jnp.int8)] + args        # 4x smaller than int32

    attn, out = pl.pallas_call(
        kernel,
        out_shape=(jax.ShapeDtypeStruct((B, Lq, Lk), out_dtype),
                   jax.ShapeDtypeStruct((B, Lq, Dv), out_dtype)),
        grid=grid,
        in_specs=in_specs,
        out_specs=(pl.BlockSpec((Bb, Lq, Lk), lambda b: (b, 0, 0)),
                   pl.BlockSpec((Bb, Lq, Dv), lambda b: (b, 0, 0))),
        compiler_params=pltpu.CompilerParams(
            dimension_semantics=("parallel",),
            vmem_limit_bytes=vmem_limit),
    )(*args)
    return attn, out
    # TODO(synk): for production (long Lq/Lk) add an Lq grid axis + flash-style
    # online-softmax Lk loop so the (Lq, Lk) attn block never has to be VMEM
    # resident at full extent (needed to fit v7x's 64 MiB VMEM).


def sdpa_reference(q, k, v, scale, mask=None):
    """Pure-JAX reference matching the PyTorch forward."""
    u = jnp.einsum("bqd,bkd->bqk", q, k) / scale
    if mask is not None:
        u = jnp.where(mask, -jnp.inf, u)
    attn = jax.nn.softmax(u, axis=-1)
    out = jnp.einsum("bqk,bkd->bqd", attn, v)
    return attn, out


if __name__ == "__main__":
    # Small shapes consistent with the module: batch=2, seq=16, d_k=d_v=32,
    # scale = sqrt(d_k)  (the usual scaled-dot-product choice).
    B, Lq, Lk, Dk, Dv = 2, 16, 16, 32, 32
    scale = float(Dk) ** 0.5

    key = jax.random.PRNGKey(0)
    kq, kk, kv = jax.random.split(key, 3)
    q = jax.random.normal(kq, (B, Lq, Dk), dtype=jnp.float32)
    k = jax.random.normal(kk, (B, Lk, Dk), dtype=jnp.float32)
    v = jax.random.normal(kv, (B, Lk, Dv), dtype=jnp.float32)

    # --- case 1: mask=None ---
    attn, out = sdpa_forward(q, k, v, scale)
    attn, out = jax.block_until_ready((attn, out))
    attn_r, out_r = sdpa_reference(q, k, v, scale)
    assert attn.shape == (B, Lq, Lk) and out.shape == (B, Lq, Dv)
    assert jnp.allclose(attn, attn_r, atol=2e-3, rtol=2e-3), (
        float(jnp.max(jnp.abs(attn - attn_r))))
    assert jnp.allclose(out, out_r, atol=2e-3, rtol=2e-3), (
        float(jnp.max(jnp.abs(out - out_r))))

    # --- case 2: boolean mask (causal; True = masked_fill with -inf) ---
    causal = jnp.triu(jnp.ones((Lq, Lk), dtype=bool), 1)
    mask = jnp.broadcast_to(causal, (B, Lq, Lk))
    attn_m, out_m = sdpa_forward(q, k, v, scale, mask=mask)
    attn_m, out_m = jax.block_until_ready((attn_m, out_m))
    attn_mr, out_mr = sdpa_reference(q, k, v, scale, mask=mask)
    assert jnp.allclose(attn_m, attn_mr, atol=2e-3, rtol=2e-3), (
        float(jnp.max(jnp.abs(attn_m - attn_mr))))
    assert jnp.allclose(out_m, out_mr, atol=2e-3, rtol=2e-3), (
        float(jnp.max(jnp.abs(out_m - out_mr))))

    print("KERNEL_OK")
</pallas_src>

<mosaic_0001>
module attributes {stable_mosaic.version = 11 : i64} {
  func.func @_sdpa_kernel(%arg0: i32, %arg1: memref<1x16x32xf32, #tpu.memory_space<vmem>>, %arg2: memref<1x16x32xf32, #tpu.memory_space<vmem>>, %arg3: memref<1x16x32xf32, #tpu.memory_space<vmem>>, %arg4: memref<1x16x16xf32, #tpu.memory_space<vmem>>, %arg5: memref<1x16x32xf32, #tpu.memory_space<vmem>>) attributes {dimension_semantics = [#tpu.dimension_semantics<parallel>], iteration_bounds = array<i64: 2>, scalar_prefetch = 0 : i64, scratch_operands = 0 : i64, tpu.core_type = #tpu.core_type<tc>, window_params = [{transform_indices = @transform_0, window_bounds = array<i64: 1, 16, 32>}, {transform_indices = @transform_1, window_bounds = array<i64: 1, 16, 32>}, {transform_indices = @transform_2, window_bounds = array<i64: 1, 16, 32>}, {transform_indices = @transform_3, window_bounds = array<i64: 1, 16, 16>}, {transform_indices = @transform_4, window_bounds = array<i64: 1, 16, 32>}]} {
    %c0 = arith.constant 0 : index
    %c0_0 = arith.constant 0 : index
    %c0_1 = arith.constant 0 : index
    %0 = vector.load %arg1[%c0, %c0_0, %c0_1] : memref<1x16x32xf32, #tpu.memory_space<vmem>>, vector<1x16x32xf32>
    %c0_2 = arith.constant 0 : index
    %c0_3 = arith.constant 0 : index
    %c0_4 = arith.constant 0 : index
    %1 = vector.load %arg2[%c0_2, %c0_3, %c0_4] : memref<1x16x32xf32, #tpu.memory_space<vmem>>, vector<1x16x32xf32>
    %c0_5 = arith.constant 0 : index
    %c0_6 = arith.constant 0 : index
    %c0_7 = arith.constant 0 : index
    %2 = vector.load %arg3[%c0_5, %c0_6, %c0_7] : memref<1x16x32xf32, #tpu.memory_space<vmem>>, vector<1x16x32xf32>
    "tpu.trace_start"() <{level = 10 : i32, message = "bqd,bkd->bqk"}> : () -> ()
    %cst = arith.constant dense<0.000000e+00> : vector<1x16x16xf32>
    %3 = tpu.matmul %0, %1, %cst {dimension_numbers = #tpu.dot_dimension_numbers<[2], [2], [1], [1], [0, 0, 0, 1, 1, 1], [0], [0]>} : vector<1x16x32xf32>, vector<1x16x32xf32>, vector<1x16x16xf32> -> vector<1x16x16xf32>
    "tpu.trace_stop"() : () -> ()
    %cst_8 = arith.constant 0.176776692 : f32
    %4 = vector.broadcast %cst_8 : f32 to vector<1x16x16xf32>
    %5 = arith.mulf %3, %4 : vector<1x16x16xf32>
    %cst_9 = arith.constant dense<0xFF800000> : vector<1x16xf32>
    %6 = vector.multi_reduction <maximumf>, %5, %cst_9 [2] : vector<1x16x16xf32> to vector<1x16xf32>
    %7 = vector.shape_cast %6 : vector<1x16xf32> to vector<1x16x1xf32>
    %8 = vector.broadcast %7 : vector<1x16x1xf32> to vector<1x16x16xf32>
    %9 = arith.subf %5, %8 : vector<1x16x16xf32>
    %10 = math.exp %9 : vector<1x16x16xf32>
    %cst_10 = arith.constant dense<0.000000e+00> : vector<1x16xf32>
    %11 = vector.multi_reduction <add>, %10, %cst_10 [2] : vector<1x16x16xf32> to vector<1x16xf32>
    %12 = vector.shape_cast %11 : vector<1x16xf32> to vector<1x16x1xf32>
    %13 = vector.broadcast %12 : vector<1x16x1xf32> to vector<1x16x16xf32>
    %14 = arith.divf %10, %13 : vector<1x16x16xf32>
    %c0_11 = arith.constant 0 : index
    %c0_12 = arith.constant 0 : index
    %c0_13 = arith.constant 0 : index
    %15 = vector.load %arg4[%c0_11, %c0_12, %c0_13] : memref<1x16x16xf32, #tpu.memory_space<vmem>>, vector<1x16x16xf32>
    tpu.vector_store %arg4[%c0_11, %c0_12, %c0_13], %14 {strides = array<i32>} : memref<1x16x16xf32, #tpu.memory_space<vmem>>, vector<1x16x16xf32>,
    "tpu.trace_start"() <{level = 10 : i32, message = "bqk,bkd->bqd"}> : () -> ()
    %cst_14 = arith.constant dense<0.000000e+00> : vector<1x16x32xf32>
    %16 = tpu.matmul %14, %2, %cst_14 {dimension_numbers = #tpu.dot_dimension_numbers<[2], [1], [1], [2], [0, 0, 0, 1, 1, 2], [0], [0]>} : vector<1x16x16xf32>, vector<1x16x32xf32>, vector<1x16x32xf32> -> vector<1x16x32xf32>
    "tpu.trace_stop"() : () -> ()
    %c0_15 = arith.constant 0 : index
    %c0_16 = arith.constant 0 : index
    %c0_17 = arith.constant 0 : index
    %17 = vector.load %arg5[%c0_15, %c0_16, %c0_17] : memref<1x16x32xf32, #tpu.memory_space<vmem>>, vector<1x16x32xf32>
    tpu.vector_store %arg5[%c0_15, %c0_16, %c0_17], %16 {strides = array<i32>} : memref<1x16x32xf32, #tpu.memory_space<vmem>>, vector<1x16x32xf32>,
    return
  }
  func.func @transform_0(%arg0: i32) -> (i32, i32, i32) {
    %c0_i32 = arith.constant 0 : i32
    %c0_i32_0 = arith.constant 0 : i32
    %c0_i32_1 = arith.constant 0 : i32
    return %arg0, %c0_i32, %c0_i32_0 : i32, i32, i32
  }
  func.func @transform_1(%arg0: i32) -> (i32, i32, i32) {
    %c0_i32 = arith.constant 0 : i32
    %c0_i32_0 = arith.constant 0 : i32
    %c0_i32_1 = arith.constant 0 : i32
    return %arg0, %c0_i32, %c0_i32_0 : i32, i32, i32
  }
  func.func @transform_2(%arg0: i32) -> (i32, i32, i32) {
    %c0_i32 = arith.constant 0 : i32
    %c0_i32_0 = arith.constant 0 : i32
    %c0_i32_1 = arith.constant 0 : i32
    return %arg0, %c0_i32, %c0_i32_0 : i32, i32, i32
  }
  func.func @transform_3(%arg0: i32) -> (i32, i32, i32) {
    %c0_i32 = arith.constant 0 : i32
    %c0_i32_0 = arith.constant 0 : i32
    %c0_i32_1 = arith.constant 0 : i32
    return %arg0, %c0_i32, %c0_i32_0 : i32, i32, i32
  }
  func.func @transform_4(%arg0: i32) -> (i32, i32, i32) {
    %c0_i32 = arith.constant 0 : i32
    %c0_i32_0 = arith.constant 0 : i32
    %c0_i32_1 = arith.constant 0 : i32
    return %arg0, %c0_i32, %c0_i32_0 : i32, i32, i32
  }
}

</mosaic_0001>

<llo_original>
// kernel: tpu_custom_call.1
$region0: #{tpu_custom_call.1}
  #allocation0 [shape = 'u32[]', space=smem, size = 0x4, offset = 0x4, fixed_abs, tag = 'smem constant byte address 0x4 - core index']
  #allocation1 [shape = 'u32[72,128]{1,0:T(1,128)}', space=vmem, size = 0x9000, scoped, tag = 'internal scratch']
  %s0 = inlined_call_operand.hbm [shape: f32[2,16,32], index: 0, kind: input, shape index: {}]
  %s1 = inlined_call_operand.hbm [shape: f32[2,16,32], index: 1, kind: input, shape index: {}]
  %s2 = inlined_call_operand.hbm [shape: f32[2,16,32], index: 2, kind: input, shape index: {}]
  %s3 = inlined_call_operand.hbm [shape: f32[2,16,16], index: 3, kind: output, shape index: {0}]
  %s4 = inlined_call_operand.hbm [shape: f32[2,16,32], index: 4, kind: output, shape index: {1}]
  %5 = xla_tuple %s3, %s4
  %s6 = sld [smem:[#allocation0]]
  $region65: #{tpu_custom_call.1} parent=0
    _
  %s8 = ssub.s32 1, %s6
  %s9 = scalar_select 0, %s8, %s6
  $region1: #{tpu_custom_call.1} parent=0
    #allocation2 [shape = 'u8[16384]{0}', space=vmem, size = 0x4000, scoped, tag = 'input window, operand 0']
    #allocation3 [shape = 's32[2]{0}', space=sflag, size = 0x8, scoped, tag = 'scoped memory for tpu_custom_call.1']
    #allocation4 [shape = 's32[2]{0}', space=sflag, size = 0x8, scoped, tag = 'scoped memory for tpu_custom_call.1']
    #allocation5 [shape = 'u8[16384]{0}', space=vmem, size = 0x4000, scoped, tag = 'input window, operand 1']
    #allocation6 [shape = 's32[2]{0}', space=sflag, size = 0x8, scoped, tag = 'scoped memory for tpu_custom_call.1']
    #allocation7 [shape = 'u8[16384]{0}', space=vmem, size = 0x4000, scoped, tag = 'input window, operand 2']
    #allocation8 [shape = 'u8[16384]{0}', space=vmem, size = 0x4000, scoped, tag = 'output window, operand 0']
    #allocation9 [shape = 'u8[16384]{0}', space=vmem, size = 0x4000, scoped, tag = 'output window, operand 1']
    #allocation10 [shape = 's32[2]{0}', space=sflag, size = 0x8, scoped, tag = 'scoped memory for tpu_custom_call.1']
    %10 = vsyncpa [#allocation3], 0
    %s11 = scalar_lea.sflag [#allocation3], 1
    %12 = vsyncpa %s11, 0
    %13 = vsyncpa [#allocation6], 0
    %s14 = scalar_lea.sflag [#allocation6], 1
    %15 = vsyncpa %s14, 0
    %16 = vsyncpa [#allocation4], 0
    %s17 = scalar_lea.sflag [#allocation4], 1
    %18 = vsyncpa %s17, 0
    %19 = vsyncpa [#allocation10], 0
    %s20 = scalar_lea.sflag [#allocation10], 1
    %21 = vsyncpa %s20, 0
    loop: start=0, step=1, limit=4
    $region2: #{tpu_custom_call.1} parent=1 // loop_pre_header
      _
    $region3: #{tpu_custom_call.1} parent=1 // loop_header
      %s23 = sphi 0, %s27
      %p24 = scmp.ge.s32.totalorder %s23, 4
      %s33 = sphi 0, %s35
      %s36 = sphi 0, %s33
      %s37 = sphi 0, %s36
      %s53 = sphi 0, %s37
      %s59 = sphi 0, %s61
      %s62 = sphi 0, %s59
      %s63 = sphi 0, %s62
      %s79 = sphi 0, %s63
      %s85 = sphi 0, %s87
      %s88 = sphi 0, %s85
      %s89 = sphi 0, %s88
      %s105 = sphi 0, %s89
      %s111 = sphi 0, %s113
      %s114 = sphi 0, %s111
      %s115 = sphi 0, %s114
      %s131 = sphi 0, %s115
      %s137 = sphi 0, %s139
      %s140 = sphi 0, %s137
      %s141 = sphi 0, %s140
      %s157 = sphi 0, %s141
    $region4: #{tpu_custom_call.1} parent=1 // loop_header_branch
      %26 = sbr.rel (%p24) target = $region8
    $region5: #{tpu_custom_call.1} parent=1 // loop_body
      %s28 = ssub.s32 %s23, 1
      %s29 = ssub.s32 %s23, 2
      %s30 = sadd.s32 %s23, 1
      %s31 = ssub.s32 %s23, %s30
      %p32 = scmp.eq.s32.totalorder %s31, 0
      %s34 = sadd.s32 %s33, 1
      %s35 = scalar_select %p32, %s33, %s34
      %p38 = pneg %p32
      %p39 = scmp.eq.s32.totalorder %s23, 1
      %p40 = por %p38, %p39
      %p41 = scmp.ne.s32.totalorder %s33, %s36
      %p42 = scmp.eq.s32.totalorder %s23, 0
      %p43 = por %p41, %p42
      %p44 = scmp.ne.s32.totalorder %s33, %s36
      %p45 = scmp.eq.s32.totalorder %s28, 1
      %p46 = por %p44, %p45
      %p47 = scmp.ne.s32.totalorder %s36, %s37
      %p48 = scmp.eq.s32.totalorder %s28, 0
      %p49 = por %p47, %p48
      %p50 = scmp.ne.s32.totalorder %s36, %s37
      %p51 = scmp.eq.s32.totalorder %s29, 1
      %p52 = por %p50, %p51
      %p54 = scmp.ne.s32.totalorder %s37, %s53
      %p55 = scmp.eq.s32.totalorder %s29, 0
      %p56 = por %p54, %p55
      %s57 = ssub.s32 %s23, %s30
      %p58 = scmp.eq.s32.totalorder %s57, 0
      %s60 = sadd.s32 %s59, 1
      %s61 = scalar_select %p58, %s59, %s60
      %p64 = pneg %p58
      %p65 = scmp.eq.s32.totalorder %s23, 1
      %p66 = por %p64, %p65
      %p67 = scmp.ne.s32.totalorder %s59, %s62
      %p68 = scmp.eq.s32.totalorder %s23, 0
      %p69 = por %p67, %p68
      %p70 = scmp.ne.s32.totalorder %s59, %s62
      %p71 = scmp.eq.s32.totalorder %s28, 1
      %p72 = por %p70, %p71
      %p73 = scmp.ne.s32.totalorder %s62, %s63
      %p74 = scmp.eq.s32.totalorder %s28, 0
      %p75 = por %p73, %p74
      %p76 = scmp.ne.s32.totalorder %s62, %s63
      %p77 = scmp.eq.s32.totalorder %s29, 1
      %p78 = por %p76, %p77
      %p80 = scmp.ne.s32.totalorder %s63, %s79
      %p81 = scmp.eq.s32.totalorder %s29, 0
      %p82 = por %p80, %p81
      %s83 = ssub.s32 %s23, %s30
      %p84 = scmp.eq.s32.totalorder %s83, 0
      %s86 = sadd.s32 %s85, 1
      %s87 = scalar_select %p84, %s85, %s86
      %p90 = pneg %p84
      %p91 = scmp.eq.s32.totalorder %s23, 1
      %p92 = por %p90, %p91
      %p93 = scmp.ne.s32.totalorder %s85, %s88
      %p94 = scmp.eq.s32.totalorder %s23, 0
      %p95 = por %p93, %p94
      %p96 = scmp.ne.s32.totalorder %s85, %s88
      %p97 = scmp.eq.s32.totalorder %s28, 1
      %p98 = por %p96, %p97
      %p99 = scmp.ne.s32.totalorder %s88, %s89
      %p100 = scmp.eq.s32.totalorder %s28, 0
      %p101 = por %p99, %p100
      %p102 = scmp.ne.s32.totalorder %s88, %s89
      %p103 = scmp.eq.s32.totalorder %s29, 1
      %p104 = por %p102, %p103
      %p106 = scmp.ne.s32.totalorder %s89, %s105
      %p107 = scmp.eq.s32.totalorder %s29, 0
      %p108 = por %p106, %p107
      %s109 = ssub.s32 %s23, %s30
      %p110 = scmp.eq.s32.totalorder %s109, 0
      %s112 = sadd.s32 %s111, 1
      %s113 = scalar_select %p110, %s111, %s112
      %p116 = pneg %p110
      %p117 = scmp.eq.s32.totalorder %s23, 1
      %p118 = por %p116, %p117
      %p119 = scmp.ne.s32.totalorder %s111, %s114
      %p120 = scmp.eq.s32.totalorder %s23, 0
      %p121 = por %p119, %p120
      %p122 = scmp.ne.s32.totalorder %s111, %s114
      %p123 = scmp.eq.s32.totalorder %s28, 1
      %p124 = por %p122, %p123
      %p125 = scmp.ne.s32.totalorder %s114, %s115
      %p126 = scmp.eq.s32.totalorder %s28, 0
      %p127 = por %p125, %p126
      %p128 = scmp.ne.s32.totalorder %s114, %s115
      %p129 = scmp.eq.s32.totalorder %s29, 1
      %p130 = por %p128, %p129
      %p132 = scmp.ne.s32.totalorder %s115, %s131
      %p133 = scmp.eq.s32.totalorder %s29, 0
      %p134 = por %p132, %p133
      %s135 = ssub.s32 %s23, %s30
      %p136 = scmp.eq.s32.totalorder %s135, 0
      %s138 = sadd.s32 %s137, 1
      %s139 = scalar_select %p136, %s137, %s138
      %p142 = pneg %p136
      %p143 = scmp.eq.s32.totalorder %s23, 1
      %p144 = por %p142, %p143
      %p145 = scmp.ne.s32.totalorder %s137, %s140
      %p146 = scmp.eq.s32.totalorder %s23, 0
      %p147 = por %p145, %p146
      %p148 = scmp.ne.s32.totalorder %s137, %s140
      %p149 = scmp.eq.s32.totalorder %s28, 1
      %p150 = por %p148, %p149
      %p151 = scmp.ne.s32.totalorder %s140, %s141
      %p152 = scmp.eq.s32.totalorder %s28, 0
      %p153 = por %p151, %p152
      %p154 = scmp.ne.s32.totalorder %s140, %s141
      %p155 = scmp.eq.s32.totalorder %s29, 1
      %p156 = por %p154, %p155
      %p158 = scmp.ne.s32.totalorder %s141, %s157
      %p159 = scmp.eq.s32.totalorder %s29, 0
      %p160 = por %p158, %p159
      %p161 = scmp.le.s32.totalorder 1, %s23
      %p162 = scmp.lt.s32.totalorder %s23, 3
      %p163 = pnand %p161, %p162
      %p164 = pneg %p163
      // Predicated region
      $region9: #{tpu_custom_call.1} parent=5 // pred_check
        _
      $region10: #{tpu_custom_call.1} parent=5 // pred_check_branch
        %166 = sbr.rel (%p163) target = $region12
      $region11: #{tpu_custom_call.1} parent=5 // pred_region
        %s167 = ssub.s32 %s23, 1
      $region12: #{tpu_custom_call.1} parent=5 // pred_fallthru
        _
      %p168 = scmp.lt.s32.totalorder %s23, 2
      // Predicated region
      $region13: #{tpu_custom_call.1} parent=5 // pred_check
        %p169 = pneg %p168
      $region14: #{tpu_custom_call.1} parent=5 // pred_check_branch
        %171 = sbr.rel (%p169) target = $region16
      $region15: #{tpu_custom_call.1} parent=5 // pred_region
        // Predicated region
        $region17: #{tpu_custom_call.1} parent=15 // pred_check
          %p172 = pneg %p43
        $region18: #{tpu_custom_call.1} parent=15 // pred_check_branch
          %174 = sbr.rel (%p172) target = $region20
        $region19: #{tpu_custom_call.1} parent=15 // pred_region
          %s175 = sand.u32 %s33, 1
          %s176 = scalar_lea.sflag [#allocation3], %s175
          %s177 = sand.u32 %s33, 1
          %s178 = smul.addr %s177, 16
          %s179 = scalar_lea.vmem [#allocation2], %s178
          %181 = vsyncadd %s176, 0
          %s182 = smul.addr %s23, 2
          %s183 = smul.addr %s182, 8
          %s184 = scalar_lea.hbm %s0, %s183
          %s185 = sshll.u32 %s184, 4
          %s186 = int_to_ptr.hbm [resolvable:$true] %s185
          %s187 = sshll.u32 %s179, 4
          %s188 = int_to_ptr.vmem [resolvable:$true] %s187
          %193 = dma.hbm_to_vmem [thread:$0]  %s186, 256, %s188, %s176, 128, 128, 8
        $region20: #{tpu_custom_call.1} parent=15 // pred_fallthru
          _
        // Predicated region
        $region21: #{tpu_custom_call.1} parent=15 // pred_check
          %p194 = pneg %p69
        $region22: #{tpu_custom_call.1} parent=15 // pred_check_branch
          %196 = sbr.rel (%p194) target = $region24
        $region23: #{tpu_custom_call.1} parent=15 // pred_region
          %s197 = sand.u32 %s23, 1
          %s198 = scalar_lea.sflag [#allocation6], %s197
          %s199 = sand.u32 %s59, 1
          %s200 = smul.addr %s199, 16
          %s201 = scalar_lea.vmem [#allocation5], %s200
          %203 = vsyncadd %s198, 0
          %s204 = smul.addr %s23, 2
          %s205 = smul.addr %s204, 8
          %s206 = scalar_lea.hbm %s1, %s205
          %s207 = sshll.u32 %s206, 4
          %s208 = int_to_ptr.hbm [resolvable:$true] %s207
          %s209 = sshll.u32 %s201, 4
          %s210 = int_to_ptr.vmem [resolvable:$true] %s209
          %215 = dma.hbm_to_vmem [thread:$0]  %s208, 256, %s210, %s198, 128, 128, 8
        $region24: #{tpu_custom_call.1} parent=15 // pred_fallthru
          _
        // Predicated region
        $region25: #{tpu_custom_call.1} parent=15 // pred_check
          %p216 = pneg %p95
        $region26: #{tpu_custom_call.1} parent=15 // pred_check_branch
          %218 = sbr.rel (%p216) target = $region28
        $region27: #{tpu_custom_call.1} parent=15 // pred_region
          %s219 = sand.u32 %s23, 1
          %s220 = scalar_lea.sflag [#allocation6], %s219
          %s221 = sand.u32 %s85, 1
          %s222 = smul.addr %s221, 16
          %s223 = scalar_lea.vmem [#allocation7], %s222
          %225 = vsyncadd %s220, 0
          %s226 = smul.addr %s23, 2
          %s227 = smul.addr %s226, 8
          %s228 = scalar_lea.hbm %s2, %s227
          %s229 = sshll.u32 %s228, 4
          %s230 = int_to_ptr.hbm [resolvable:$true] %s229
          %s231 = sshll.u32 %s223, 4
          %s232 = int_to_ptr.vmem [resolvable:$true] %s231
          %237 = dma.hbm_to_vmem [thread:$0]  %s230, 256, %s232, %s220, 128, 128, 8
        $region28: #{tpu_custom_call.1} parent=15 // pred_fallthru
          _
      $region16: #{tpu_custom_call.1} parent=5 // pred_fallthru
        _
      %p238 = scmp.le.s32.totalorder 1, %s23
      %p239 = scmp.lt.s32.totalorder %s23, 3
      %p240 = pnand %p238, %p239
      %p241 = pneg %p240
      // Predicated region
      $region29: #{tpu_custom_call.1} parent=5 // pred_check
        _
      $region30: #{tpu_custom_call.1} parent=5 // pred_check_branch
        %243 = sbr.rel (%p240) target = $region32
      $region31: #{tpu_custom_call.1} parent=5 // pred_region
        %s244 = ssub.s32 %s23, 1
        %s245 = sand.u32 %s36, 1
        %s246 = scalar_lea.sflag [#allocation3], %s245
        %s247 = sand.u32 %s36, 1
        %s248 = smul.addr %s247, 16
        %s249 = scalar_lea.vmem [#allocation2], %s248
        // Predicated region
        $region33: #{tpu_custom_call.1} parent=31 // pred_check
          %p250 = pneg %p49
        $region34: #{tpu_custom_call.1} parent=31 // pred_check_branch
          %252 = sbr.rel (%p250) target = $region36
        $region35: #{tpu_custom_call.1} parent=31 // pred_region
          %254 = dma.done %s246, 256
        $region36: #{tpu_custom_call.1} parent=31 // pred_fallthru
          _
        %s255 = sand.u32 %s28, 1
        %s256 = scalar_lea.sflag [#allocation6], %s255
        %s257 = sand.u32 %s62, 1
        %s258 = smul.addr %s257, 16
        %s259 = scalar_lea.vmem [#allocation5], %s258
        // Predicated region
        $region37: #{tpu_custom_call.1} parent=31 // pred_check
          %p260 = pneg %p75
        $region38: #{tpu_custom_call.1} parent=31 // pred_check_branch
          %262 = sbr.rel (%p260) target = $region40
        $region39: #{tpu_custom_call.1} parent=31 // pred_region
          %264 = dma.done %s256, 256
        $region40: #{tpu_custom_call.1} parent=31 // pred_fallthru
          _
        %s265 = sand.u32 %s28, 1
        %s266 = scalar_lea.sflag [#allocation6], %s265
        %s267 = sand.u32 %s88, 1
        %s268 = smul.addr %s267, 16
        %s269 = scalar_lea.vmem [#allocation7], %s268
        // Predicated region
        $region41: #{tpu_custom_call.1} parent=31 // pred_check
          %p270 = pneg %p101
        $region42: #{tpu_custom_call.1} parent=31 // pred_check_branch
          %272 = sbr.rel (%p270) target = $region44
        $region43: #{tpu_custom_call.1} parent=31 // pred_region
          %274 = dma.done %s266, 256
        $region44: #{tpu_custom_call.1} parent=31 // pred_fallthru
          _
        %s275 = sand.u32 %s36, 1
        %s276 = scalar_lea.sflag [#allocation3], %s275
        %s277 = sand.u32 %s36, 1
        %s278 = smul.addr %s277, 16
        %s279 = scalar_lea.vmem [#allocation2], %s278
        %p280 = pneg %p49
        %p281 = pneg %p46
        %s282 = sand.u32 %s28, 1
        %s283 = scalar_lea.sflag [#allocation6], %s282
        %s284 = sand.u32 %s62, 1
        %s285 = smul.addr %s284, 16
        %s286 = scalar_lea.vmem [#allocation5], %s285
        %p287 = pneg %p75
        %p288 = pneg %p72
        %s289 = sand.u32 %s28, 1
        %s290 = scalar_lea.sflag [#allocation6], %s289
        %s291 = sand.u32 %s88, 1
        %s292 = smul.addr %s291, 16
        %s293 = scalar_lea.vmem [#allocation7], %s292
        %p294 = pneg %p101
        %p295 = pneg %p98
        %p296 = pneg %p127
        %p297 = pneg %p124
        %s298 = sand.u32 %s114, 1
        %s299 = scalar_lea.sflag [#allocation4], %s298
        %s300 = sand.u32 %s114, 1
        %s301 = smul.addr %s300, 16
        %s302 = scalar_lea.vmem [#allocation8], %s301
        %p303 = pneg %p153
        %p304 = pneg %p150
        %s305 = sand.u32 %s140, 1
        %s306 = scalar_lea.sflag [#allocation10], %s305
        %s307 = sand.u32 %s140, 1
        %s308 = smul.addr %s307, 16
        %s309 = scalar_lea.vmem [#allocation9], %s308
        %v310 = vld [vmem:[%s249] sm:$0xff]
        %v311 = vld [vmem:[%s249 + $0x8] sm:$0xff]
        %v312 = vld [vmem:[%s259] sm:$0xff]
        %v313 = vld [vmem:[%s259 + $0x8] sm:$0xff]
        %v314 = vld [vmem:[%s269] sm:$0xff]
        %v315 = vld [vmem:[%s269 + $0x8] sm:$0xff]
        %vm316 = vcmask 261120
        %v318 = vsel %vm316, %v310, 0
        %v321 = vsel %vm316, %v311, 0
        %v324 = vsel %vm316, %v312, 0
        %v327 = vsel %vm316, %v313, 0
        %329 = vmatpush.xpose.msra.mxu0 0.0
        %330 = vmatpush.xpose.msra.mxu0 0.0
        %331 = vmatpush.xpose.msra.mxu0 0.0
        %332 = vmatpush.xpose.msra.mxu0 0.0
        %333 = vmatpush.xpose.msra.mxu0 0.0
        %334 = vmatpush.xpose.msra.mxu0 0.0
        %335 = vmatpush.xpose.msra.mxu0 0.0
        %336 = vmatpush.xpose.msra.mxu0 0.0
        %337 = vmatpush.xpose.msra.mxu0 0.0
        %338 = vmatpush.xpose.msra.mxu0 0.0
        %339 = vmatpush.xpose.msra.mxu0 0.0
        %340 = vmatpush.xpose.msra.mxu0 0.0
        %341 = vmatpush.xpose.msra.mxu0 0.0
        %342 = vmatpush.xpose.msra.mxu0 0.0
        %343 = vmatpush.xpose.msra.mxu0 %v327
        %344 = vmatpush.xpose.msra.mxu0 %v324
        %345 = vmatmul.f32.gmra.mxu0 %v318
        %v346 = vpop.f32.mrf.mxu0
        %v347 = vadd.f32 0.0, %v346
        %348 = vmatmul.f32.gmra.mxu0 %v321
        %v349 = vpop.f32.mrf.mxu0
        %v350 = vadd.f32 0.0, %v349
        %351 = vdwg.mxu0
        %v352 = vmul.f32 %v347, 0.17677669
        %v353 = vmul.f32 %v350, 0.17677669
        %vm354 = vcmask 130048
        %v355 = vsel %vm354, %v352, -inf
        %356 = vmax.xlane.f32.xlu0 %v355
        %v357 = vpop.xlane.xlu0 %356
        %v358 = vsel %vm354, %v353, -inf
        %359 = vmax.xlane.f32.xlu0 %v358
        %v360 = vpop.xlane.xlu0 %359
        %v361 = vsub.f32 %v352, %v357
        %v362 = vsub.f32 %v353, %v360
        %v363 = vmul.f32 %v361, 1.442695
        %v364 = vpow.pop %v363
        %v365 = vmul.f32 %v362, 1.442695
        %v366 = vpow.pop %v365
        %v367 = vsel %vm354, %v364, 0.0
        %368 = vadd.xlane.f32.xlu0 %v367
        %v369 = vpop.xlane.xlu0 %368
        %v370 = vsel %vm354, %v366, 0.0
        %371 = vadd.xlane.f32.xlu0 %v370
        %v372 = vpop.xlane.xlu0 %371
        %v373 = vrcp.pop %v369
        %v374 = vmul.f32 %v369, %v373
        %v375 = vsub.f32 1.0, %v374
        %v376 = vmul.f32 %v373, %v375
        %v377 = vadd.f32 %v373, %v376
        %vm378 = vweird.f32 %v369
        %vm379 = vweird.f32 %v373
        %vm380 = vmor %vm378, %vm379
        %v381 = vsel %vm380, %v373, %v377
        %v382 = vand.u32 2147483647, %v369
        %vm383 = vcmp.eq.f32.partialorder %v382, 8.507059e+37
        %v384 = vand.u32 %v369, 2147483648
        %v385 = vor.u32 1.1754944e-38, %v384
        %v386 = vsel %vm383, %v385, %v381
        %v387 = vmul.f32 %v364, %v386
        %v388 = vrcp.pop %v372
        %v389 = vmul.f32 %v372, %v388
        %v390 = vsub.f32 1.0, %v389
        %v391 = vmul.f32 %v388, %v390
        %v392 = vadd.f32 %v388, %v391
        %vm393 = vweird.f32 %v372
        %vm394 = vweird.f32 %v388
        %vm395 = vmor %vm393, %vm394
        %v396 = vsel %vm395, %v388, %v392
        %v397 = vand.u32 2147483647, %v372
        %vm398 = vcmp.eq.f32.partialorder %v397, 8.507059e+37
        %v399 = vand.u32 %v372, 2147483648
        %v400 = vor.u32 1.1754944e-38, %v399
        %v401 = vsel %vm398, %v400, %v396
        %v402 = vmul.f32 %v366, %v401
        %403 = vst.msk [vmem:[%s302] sm:$0xff] %vm354, %v387
        %404 = vst.msk [vmem:[%s302 + $0x8] sm:$0xff] %vm354, %v402
        %v406 = vsel %vm354, %v387, 0
        %v409 = vsel %vm354, %v402, 0
        %411 = vmatpush.msra.mxu0 0.0
        %412 = vmatpush.msra.mxu0 0.0
        %413 = vmatpush.msra.mxu0 0.0
        %414 = vmatpush.msra.mxu0 0.0
        %415 = vmatpush.msra.mxu0 0.0
        %416 = vmatpush.msra.mxu0 0.0
        %417 = vmatpush.msra.mxu0 0.0
        %418 = vmatpush.msra.mxu0 0.0
        %419 = vmatpush.msra.mxu0 0.0
        %420 = vmatpush.msra.mxu0 0.0
        %421 = vmatpush.msra.mxu0 0.0
        %422 = vmatpush.msra.mxu0 0.0
        %423 = vmatpush.msra.mxu0 0.0
        %424 = vmatpush.msra.mxu0 0.0
        %425 = vmatpush.msra.mxu0 %v315
        %426 = vmatpush.msra.mxu0 %v314
        %427 = vmatmul.f32.gmra.mxu0 %v406
        %v428 = vpop.f32.mrf.mxu0
        %v429 = vadd.f32 0.0, %v428
        %430 = vmatmul.f32.gmra.mxu0 %v409
        %v431 = vpop.f32.mrf.mxu0
        %v432 = vadd.f32 0.0, %v431
        %433 = vdwg.mxu0
        %434 = vst.msk [vmem:[%s309] sm:$0xff] %vm316, %v429
        %435 = vst.msk [vmem:[%s309 + $0x8] sm:$0xff] %vm316, %v432
        %s436 = sand.u32 %s114, 1
        %s437 = scalar_lea.sflag [#allocation4], %s436
        %s438 = sand.u32 %s114, 1
        %s439 = smul.addr %s438, 16
        %s440 = scalar_lea.vmem [#allocation8], %s439
        %s441 = sand.u32 %s140, 1
        %s442 = scalar_lea.sflag [#allocation10], %s441
        %s443 = sand.u32 %s140, 1
        %s444 = smul.addr %s443, 16
        %s445 = scalar_lea.vmem [#allocation9], %s444
        // Predicated region
        $region45: #{tpu_custom_call.1} parent=31 // pred_check
          %p446 = pneg %p124
        $region46: #{tpu_custom_call.1} parent=31 // pred_check_branch
          %448 = sbr.rel (%p446) target = $region48
        $region47: #{tpu_custom_call.1} parent=31 // pred_region
          %450 = vsyncadd %s437, 0
          %s451 = smul.addr %s28, 2
          %s452 = smul.addr %s451, 8
          %s453 = scalar_lea.hbm %s3, %s452
          %s454 = sshll.u32 %s440, 4
          %s455 = int_to_ptr.vmem [resolvable:$true] %s454
          %s456 = sshll.u32 %s453, 4
          %s457 = int_to_ptr.hbm [resolvable:$true] %s456
          %462 = dma.vmem_to_hbm [thread:$0]  %s455, 256, %s457, %s437, 128, 128, 8
        $region48: #{tpu_custom_call.1} parent=31 // pred_fallthru
          _
        // Predicated region
        $region49: #{tpu_custom_call.1} parent=31 // pred_check
          %p463 = pneg %p150
        $region50: #{tpu_custom_call.1} parent=31 // pred_check_branch
          %465 = sbr.rel (%p463) target = $region52
        $region51: #{tpu_custom_call.1} parent=31 // pred_region
          %467 = vsyncadd %s442, 0
          %s468 = smul.addr %s28, 2
          %s469 = smul.addr %s468, 8
          %s470 = scalar_lea.hbm %s4, %s469
          %s471 = sshll.u32 %s445, 4
          %s472 = int_to_ptr.vmem [resolvable:$true] %s471
          %s473 = sshll.u32 %s470, 4
          %s474 = int_to_ptr.hbm [resolvable:$true] %s473
          %479 = dma.vmem_to_hbm [thread:$0]  %s472, 256, %s474, %s442, 128, 128, 8
        $region52: #{tpu_custom_call.1} parent=31 // pred_fallthru
          _
      $region32: #{tpu_custom_call.1} parent=5 // pred_fallthru
        _
      %p480 = scmp.le.s32.totalorder 2, %s23
      // Predicated region
      $region53: #{tpu_custom_call.1} parent=5 // pred_check
        %p481 = pneg %p480
      $region54: #{tpu_custom_call.1} parent=5 // pred_check_branch
        %483 = sbr.rel (%p481) target = $region56
      $region55: #{tpu_custom_call.1} parent=5 // pred_region
        %s484 = ssub.s32 %s23, 2
        // Predicated region
        $region57: #{tpu_custom_call.1} parent=55 // pred_check
          %p485 = pneg %p130
        $region58: #{tpu_custom_call.1} parent=55 // pred_check_branch
          %487 = sbr.rel (%p485) target = $region60
        $region59: #{tpu_custom_call.1} parent=55 // pred_region
          %s488 = sand.u32 %s115, 1
          %s489 = scalar_lea.sflag [#allocation4], %s488
          %s490 = sand.u32 %s115, 1
          %s491 = smul.addr %s490, 16
          %s492 = scalar_lea.vmem [#allocation8], %s491
          %494 = dma.done %s489, 256
        $region60: #{tpu_custom_call.1} parent=55 // pred_fallthru
          _
        // Predicated region
        $region61: #{tpu_custom_call.1} parent=55 // pred_check
          %p495 = pneg %p156
        $region62: #{tpu_custom_call.1} parent=55 // pred_check_branch
          %497 = sbr.rel (%p495) target = $region64
        $region63: #{tpu_custom_call.1} parent=55 // pred_region
          %s498 = sand.u32 %s141, 1
          %s499 = scalar_lea.sflag [#allocation10], %s498
          %s500 = sand.u32 %s141, 1
          %s501 = smul.addr %s500, 16
          %s502 = scalar_lea.vmem [#allocation9], %s501
          %504 = dma.done %s499, 256
        $region64: #{tpu_custom_call.1} parent=55 // pred_fallthru
          _
      $region56: #{tpu_custom_call.1} parent=5 // pred_fallthru
        _
    $region6: #{tpu_custom_call.1} parent=1 // loop_footer
      %s27 = sadd.s32 1, %s23
    $region7: #{tpu_custom_call.1} parent=1 // loop_footer_branch
      %22 = sbr.rel target = $region3
    $region8: #{tpu_custom_call.1} parent=1 // loop_exit
      _
    %505 = vsyncpa [#allocation3], 1
    %s506 = scalar_lea.sflag [#allocation3], 1
    %507 = vsyncpa %s506, 1
    %508 = vsyncpa [#allocation6], 1
    %s509 = scalar_lea.sflag [#allocation6], 1
    %510 = vsyncpa %s509, 1
    %511 = vsyncpa [#allocation4], 1
    %s512 = scalar_lea.sflag [#allocation4], 1
    %513 = vsyncpa %s512, 1
    %514 = vsyncpa [#allocation10], 1
    %s515 = scalar_lea.sflag [#allocation10], 1
    %516 = vsyncpa %s515, 1

</llo_original>
